<compile_context>
chip_gen: v5e
topology: v5e:2x2
jax: 0.10.0
libtpu: 0.0.40
codegen_flags: <defaults>
</compile_context>

<pallas_src>
import jax
import jax.numpy as jnp
from jax.experimental import pallas as pl
from jax.experimental.pallas import tpu as pltpu


def _round_up(v, m):
    return (v + m - 1) // m * m


def _pick_tile(n_pad, cap=512):
    # n_pad is a multiple of 128; pick the largest tile <= cap dividing it.
    for t in (512, 256, 128):
        if t <= cap and n_pad % t == 0:
            return t
    return 128


def gcn_kernel(adj_ref, x_ref, w_ref, out_ref, acc_ref):
    """Grid = (adj row tiles, contraction tiles over nodes)."""
    k = pl.program_id(1)

    @pl.when(k == 0)
    def _init():
        acc_ref[...] = jnp.zeros_like(acc_ref)

    # acc[i] += adj[i, k] @ x_aug[k]   (bf16 inputs, f32 accumulation on MXU)
    acc_ref[...] += jnp.dot(adj_ref[...], x_ref[...],
                            preferred_element_type=jnp.float32)

    @pl.when(k == pl.num_programs(1) - 1)
    def _finalize():
        # W_aug already carries the bias (row f_in, paired with the ones column
        # of x_aug), so this single resident f32 matmul == (x @ W.T + b)
        # propagated through adj.  Dropout is eval-mode identity.
        # TODO(synk): training-mode dropout would use pltpu.prng_seed/prng_random_bits.
        h = jnp.dot(acc_ref[...], w_ref[...], preferred_element_type=jnp.float32)
        out_ref[...] = jnp.maximum(h, 0.0).astype(out_ref.dtype)   # act = ReLU


def graph_convolution(x, w, b, adj):
    """GCN layer forward.

    x:   [N, F_in]       node features (f32)
    w:   [F_out, F_in]   nn.Linear weight (PyTorch layout)
    b:   [F_out]         nn.Linear bias
    adj: [N, N]          dense (row-normalized) adjacency
    returns [N, F_out] = relu(adj @ (x @ w.T + b))
    """
    n, f_in = x.shape
    f_out = w.shape[0]

    # ---- lane-dense padding ------------------------------------------------
    k_pad = _round_up(f_in + 1, 128)      # +1: ones column carrying the bias
    f_out_pad = _round_up(f_out, 128)
    n_pad = _round_up(n, 128)

    tm = _pick_tile(n_pad)                # output-row tile of adj
    tk = _pick_tile(n_pad)                # contraction tile over nodes

    # x_aug = [x | 1 | 0...]  in bf16 (MXU bf16 path + half the DMA bytes)
    x_aug = jnp.zeros((n_pad, k_pad), jnp.float32)
    x_aug = x_aug.at[:n, :f_in].set(x)
    x_aug = x_aug.at[:n, f_in].set(1.0)
    x_aug = x_aug.astype(jnp.bfloat16)

    adj_p = jnp.zeros((n_pad, n_pad), jnp.float32).at[:n, :n].set(adj)
    adj_p = adj_p.astype(jnp.bfloat16)

    # W_aug = [[W.T], [b], [0...]]  kept f32 so weights/bias stay exact.
    # TODO(synk): if F_in_pad > F_out_pad the opposite matmul order
    # (adj @ (x @ W.T + b)) contracts over fewer lanes and would be preferred.
    w_aug = jnp.zeros((k_pad, f_out_pad), jnp.float32)
    w_aug = w_aug.at[:f_in, :f_out].set(w.T)
    w_aug = w_aug.at[f_in, :f_out].set(b)

    grid = (n_pad // tm, n_pad // tk)

    cost = pl.CostEstimate(
        flops=2 * n_pad * n_pad * k_pad + 2 * n_pad * k_pad * f_out_pad,
        transcendentals=0,
        bytes_accessed=(adj_p.size * 2 + x_aug.size * 2
                        + w_aug.size * 4 + n_pad * f_out_pad * 4),
    )

    out_pad = pl.pallas_call(
        gcn_kernel,
        out_shape=jax.ShapeDtypeStruct((n_pad, f_out_pad), jnp.float32),
        grid_spec=pltpu.PrefetchScalarGridSpec(
            num_scalar_prefetch=0,
            grid=grid,
            in_specs=[
                pl.BlockSpec((tm, tk), lambda i, k: (i, k)),        # adj tile
                pl.BlockSpec((tk, k_pad), lambda i, k: (k, 0)),     # x_aug tile
                pl.BlockSpec((k_pad, f_out_pad), lambda i, k: (0, 0)),  # W_aug resident
            ],
            out_specs=pl.BlockSpec((tm, f_out_pad), lambda i, k: (i, 0)),
            scratch_shapes=[pltpu.VMEM((tm, k_pad), jnp.float32)],
        ),
        compiler_params=pltpu.CompilerParams(
            dimension_semantics=("parallel", "arbitrary"),
            vmem_limit_bytes=32 * 1024 * 1024,
        ),
        cost_estimate=cost,
    )(adj_p, x_aug, w_aug)

    return out_pad[:n, :f_out]


def reference(x, w, b, adj):
    return jnp.maximum(adj @ (x @ w.T + b), 0.0)


def _make_inputs(key, n, f_in, f_out):
    k_x, k_w, k_b, k_a = jax.random.split(key, 4)
    x = jax.random.normal(k_x, (n, f_in), dtype=jnp.float32)
    # Deterministic nn.Linear-style init: U(-1/sqrt(in), 1/sqrt(in))
    bound = 1.0 / (f_in ** 0.5)
    w = jax.random.uniform(k_w, (f_out, f_in), minval=-bound, maxval=bound,
                           dtype=jnp.float32)
    b = jax.random.uniform(k_b, (f_out,), minval=-bound, maxval=bound,
                           dtype=jnp.float32)
    # Dense row-normalized adjacency with self-loops (deterministic)
    a_raw = jax.random.uniform(k_a, (n, n), dtype=jnp.float32)
    adj_bin = (a_raw > 0.8).astype(jnp.float32) + jnp.eye(n, dtype=jnp.float32)
    adj = adj_bin / jnp.sum(adj_bin, axis=1, keepdims=True)
    return x, w, b, adj


if __name__ == "__main__":
    # Primary small case: 64 nodes, 32 -> 48 features.
    x, w, b, adj = _make_inputs(jax.random.PRNGKey(0), 64, 32, 48)
    out = jax.block_until_ready(graph_convolution(x, w, b, adj))
    ref = reference(x, w, b, adj)
    assert out.shape == (64, 48)
    assert jnp.allclose(out, ref, atol=2e-2, rtol=2e-2), \
        float(jnp.max(jnp.abs(out - ref)))

    # Multi-tile case: exercises the (row, k) grid, accumulator and N padding.
    x2, w2, b2, adj2 = _make_inputs(jax.random.PRNGKey(1), 320, 72, 136)
    out2 = jax.block_until_ready(graph_convolution(x2, w2, b2, adj2))
    ref2 = reference(x2, w2, b2, adj2)
    assert out2.shape == (320, 136)
    assert jnp.allclose(out2, ref2, atol=2e-2, rtol=2e-2), \
        float(jnp.max(jnp.abs(out2 - ref2)))

    print("KERNEL_OK")
</pallas_src>

<mosaic_0001>
module attributes {stable_mosaic.version = 11 : i64} {
  func.func @gcn_kernel(%arg0: i32, %arg1: i32, %arg2: memref<128x128xbf16, #tpu.memory_space<vmem>>, %arg3: memref<128x128xbf16, #tpu.memory_space<vmem>>, %arg4: memref<128x128xf32, #tpu.memory_space<vmem>>, %arg5: memref<128x128xf32, #tpu.memory_space<vmem>>, %arg6: memref<128x128xf32, #tpu.memory_space<vmem>>) attributes {dimension_semantics = [#tpu.dimension_semantics<parallel>, #tpu.dimension_semantics<arbitrary>], iteration_bounds = array<i64: 1, 1>, scalar_prefetch = 0 : i64, scratch_operands = 1 : i64, tpu.core_type = #tpu.core_type<tc>, window_params = [{transform_indices = @transform_0, window_bounds = array<i64: 128, 128>}, {transform_indices = @transform_1, window_bounds = array<i64: 128, 128>}, {pipeline_mode = #tpu.pipeline_mode<synchronous>, transform_indices = @transform_2, window_bounds = array<i64: 128, 128>}, {transform_indices = @transform_3, window_bounds = array<i64: 128, 128>}]} {
    %c0_i32 = arith.constant 0 : i32
    %0 = arith.cmpi eq, %arg1, %c0_i32 : i32
    %1 = arith.extui %0 : i1 to i32
    %c0_i32_0 = arith.constant 0 : i32
    %2 = arith.cmpi ne, %1, %c0_i32_0 : i32
    scf.if %2 {
      %cst_10 = arith.constant 0.000000e+00 : f32
      %12 = vector.broadcast %cst_10 : f32 to vector<128x128xf32>
      %c0_11 = arith.constant 0 : index
      %c0_12 = arith.constant 0 : index
      %13 = vector.load %arg6[%c0_11, %c0_12] : memref<128x128xf32, #tpu.memory_space<vmem>>, vector<128x128xf32>
      tpu.vector_store %arg6[%c0_11, %c0_12], %12 {strides = array<i32>} : memref<128x128xf32, #tpu.memory_space<vmem>>, vector<128x128xf32>,
    } else {
    }
    %c0 = arith.constant 0 : index
    %c0_1 = arith.constant 0 : index
    %3 = vector.load %arg6[%c0, %c0_1] : memref<128x128xf32, #tpu.memory_space<vmem>>, vector<128x128xf32>
    %c0_2 = arith.constant 0 : index
    %c0_3 = arith.constant 0 : index
    %4 = vector.load %arg2[%c0_2, %c0_3] : memref<128x128xbf16, #tpu.memory_space<vmem>>, vector<128x128xbf16>
    %c0_4 = arith.constant 0 : index
    %c0_5 = arith.constant 0 : index
    %5 = vector.load %arg3[%c0_4, %c0_5] : memref<128x128xbf16, #tpu.memory_space<vmem>>, vector<128x128xbf16>
    %cst = arith.constant dense<0.000000e+00> : vector<128x128xf32>
    %6 = tpu.matmul %4, %5, %cst {dimension_numbers = #tpu.dot_dimension_numbers<[1], [0], [0], [1], [0, 0, 1, 1], [], []>} : vector<128x128xbf16>, vector<128x128xbf16>, vector<128x128xf32> -> vector<128x128xf32>
    %7 = arith.addf %3, %6 : vector<128x128xf32>
    %c0_6 = arith.constant 0 : index
    %c0_7 = arith.constant 0 : index
    %8 = vector.load %arg6[%c0_6, %c0_7] : memref<128x128xf32, #tpu.memory_space<vmem>>, vector<128x128xf32>
    tpu.vector_store %arg6[%c0_6, %c0_7], %7 {strides = array<i32>} : memref<128x128xf32, #tpu.memory_space<vmem>>, vector<128x128xf32>,
    %c0_i32_8 = arith.constant 0 : i32
    %9 = arith.cmpi eq, %arg1, %c0_i32_8 : i32
    %10 = arith.extui %9 : i1 to i32
    %c0_i32_9 = arith.constant 0 : i32
    %11 = arith.cmpi ne, %10, %c0_i32_9 : i32
    scf.if %11 {
      %c0_10 = arith.constant 0 : index
      %c0_11 = arith.constant 0 : index
      %12 = vector.load %arg6[%c0_10, %c0_11] : memref<128x128xf32, #tpu.memory_space<vmem>>, vector<128x128xf32>
      %c0_12 = arith.constant 0 : index
      %c0_13 = arith.constant 0 : index
      %13 = vector.load %arg4[%c0_12, %c0_13] : memref<128x128xf32, #tpu.memory_space<vmem>>, vector<128x128xf32>
      %cst_14 = arith.constant dense<0.000000e+00> : vector<128x128xf32>
      %14 = tpu.matmul %12, %13, %cst_14 {dimension_numbers = #tpu.dot_dimension_numbers<[1], [0], [0], [1], [0, 0, 1, 1], [], []>} : vector<128x128xf32>, vector<128x128xf32>, vector<128x128xf32> -> vector<128x128xf32>
      %cst_15 = arith.constant 0.000000e+00 : f32
      %15 = vector.broadcast %cst_15 : f32 to vector<128x128xf32>
      %16 = arith.maximumf %14, %15 : vector<128x128xf32>
      %c0_16 = arith.constant 0 : index
      %c0_17 = arith.constant 0 : index
      %17 = vector.load %arg5[%c0_16, %c0_17] : memref<128x128xf32, #tpu.memory_space<vmem>>, vector<128x128xf32>
      tpu.vector_store %arg5[%c0_16, %c0_17], %16 {strides = array<i32>} : memref<128x128xf32, #tpu.memory_space<vmem>>, vector<128x128xf32>,
    } else {
    }
    return
  }
  func.func @transform_0(%arg0: i32, %arg1: i32) -> (i32, i32) {
    %c0_i32 = arith.constant 0 : i32
    return %arg0, %arg1 : i32, i32
  }
  func.func @transform_1(%arg0: i32, %arg1: i32) -> (i32, i32) {
    %c0_i32 = arith.constant 0 : i32
    %c0_i32_0 = arith.constant 0 : i32
    return %arg1, %c0_i32 : i32, i32
  }
  func.func @transform_2(%arg0: i32, %arg1: i32) -> (i32, i32) {
    %c0_i32 = arith.constant 0 : i32
    %c0_i32_0 = arith.constant 0 : i32
    %c0_i32_1 = arith.constant 0 : i32
    return %c0_i32, %c0_i32_0 : i32, i32
  }
  func.func @transform_3(%arg0: i32, %arg1: i32) -> (i32, i32) {
    %c0_i32 = arith.constant 0 : i32
    %c0_i32_0 = arith.constant 0 : i32
    return %arg0, %c0_i32 : i32, i32
  }
}

</mosaic_0001>

<llo_original>
// kernel: tpu_custom_call.1
$region0: #{tpu_custom_call.1}
  #allocation0 [shape = 'u32[]', space=smem, size = 0x4, offset = 0x4, fixed_abs, tag = 'smem constant byte address 0x4 - core index']
  #allocation1 [shape = 'u32[72,128]{1,0:T(1,128)}', space=vmem, size = 0x9000, scoped, tag = 'internal scratch']
  #allocation2 [shape = 'f32[128,128]{1,0:T(8,128)}', space=vmem, size = 0x10000, scoped, tag = 'scratch operand']
  %s0 = inlined_call_operand.hbm [shape: bf16[128,128], index: 0, kind: input, shape index: {}]
  %s1 = inlined_call_operand.hbm [shape: bf16[128,128], index: 1, kind: input, shape index: {}]
  %s2 = inlined_call_operand.hbm [shape: f32[128,128], index: 2, kind: input, shape index: {}]
  %s3 = inlined_call_operand.hbm [shape: f32[128,128], index: 3, kind: output, shape index: {}]
  %s4 = sld [smem:[#allocation0]]
  $region42: #{tpu_custom_call.1} parent=0
    _
  %s6 = ssub.s32 1, %s4
  %s7 = scalar_select 0, %s6, %s4
  $region1: #{tpu_custom_call.1} parent=0
    #allocation3 [shape = 'u8[32768]{0}', space=vmem, size = 0x8000, scoped, tag = 'input window, operand 0, single buffered']
    #allocation4 [shape = 's32[1]{0}', space=sflag, size = 0x4, scoped, tag = 'scoped memory for tpu_custom_call.1']
    #allocation5 [shape = 's32[1]{0}', space=sflag, size = 0x4, scoped, tag = 'scoped memory for tpu_custom_call.1']
    #allocation6 [shape = 'u8[32768]{0}', space=vmem, size = 0x8000, scoped, tag = 'input window, operand 1, single buffered']
    #allocation7 [shape = 's32[1]{0}', space=sflag, size = 0x4, scoped, tag = 'scoped memory for tpu_custom_call.1']
    #allocation8 [shape = 'u8[65536]{0}', space=vmem, size = 0x10000, scoped, tag = 'input window, operand 2, single buffered']
    #allocation9 [shape = 'u8[65536]{0}', space=vmem, size = 0x10000, scoped, tag = 'output window, operand 0, single buffered']
    %8 = vsyncpa [#allocation4], 0
    %9 = vsyncpa [#allocation7], 0
    %10 = vsyncpa [#allocation5], 0
    // Predicated region
    $region2: #{tpu_custom_call.1} parent=1 // pred_check
      _
    $region3: #{tpu_custom_call.1} parent=1 // pred_check_branch
      %12 = sbr.rel (0) target = $region5
    $region4: #{tpu_custom_call.1} parent=1 // pred_region
      %14 = vsyncadd [#allocation4], 0
      %s15 = sshll.u32 %s0, 4
      %s16 = int_to_ptr.hbm [resolvable:$true] %s15
      %s17 = sshll.u32 [#allocation3], 4
      %s18 = int_to_ptr.vmem [resolvable:$true] %s17
      %23 = dma.hbm_to_vmem [thread:$0]  %s16, 1024, %s18, [#allocation4], 64, 64, 4
    $region5: #{tpu_custom_call.1} parent=1 // pred_fallthru
      _
    // Predicated region
    $region6: #{tpu_custom_call.1} parent=1 // pred_check
      _
    $region7: #{tpu_custom_call.1} parent=1 // pred_check_branch
      %25 = sbr.rel (0) target = $region9
    $region8: #{tpu_custom_call.1} parent=1 // pred_region
      %27 = vsyncadd [#allocation7], 0
      %s28 = sshll.u32 %s1, 4
      %s29 = int_to_ptr.hbm [resolvable:$true] %s28
      %s30 = sshll.u32 [#allocation6], 4
      %s31 = int_to_ptr.vmem [resolvable:$true] %s30
      %36 = dma.hbm_to_vmem [thread:$0]  %s29, 1024, %s31, [#allocation7], 64, 64, 4
    $region9: #{tpu_custom_call.1} parent=1 // pred_fallthru
      _
    // Predicated region
    $region10: #{tpu_custom_call.1} parent=1 // pred_check
      _
    $region11: #{tpu_custom_call.1} parent=1 // pred_check_branch
      %38 = sbr.rel (0) target = $region13
    $region12: #{tpu_custom_call.1} parent=1 // pred_region
      %40 = vsyncadd [#allocation7], 0
      %s41 = sshll.u32 %s2, 4
      %s42 = int_to_ptr.hbm [resolvable:$true] %s41
      %s43 = sshll.u32 [#allocation8], 4
      %s44 = int_to_ptr.vmem [resolvable:$true] %s43
      %49 = dma.hbm_to_vmem [thread:$0]  %s42, 2048, %s44, [#allocation7], 128, 128, 8
    $region13: #{tpu_custom_call.1} parent=1 // pred_fallthru
      _
    // Predicated region
    $region14: #{tpu_custom_call.1} parent=1 // pred_check
      _
    $region15: #{tpu_custom_call.1} parent=1 // pred_check_branch
      %51 = sbr.rel (0) target = $region17
    $region16: #{tpu_custom_call.1} parent=1 // pred_region
      %53 = dma.done [#allocation4], 1024
    $region17: #{tpu_custom_call.1} parent=1 // pred_fallthru
      _
    // Predicated region
    $region18: #{tpu_custom_call.1} parent=1 // pred_check
      _
    $region19: #{tpu_custom_call.1} parent=1 // pred_check_branch
      %55 = sbr.rel (0) target = $region21
    $region20: #{tpu_custom_call.1} parent=1 // pred_region
      %57 = dma.done [#allocation7], 1024
    $region21: #{tpu_custom_call.1} parent=1 // pred_fallthru
      _
    // Predicated region
    $region22: #{tpu_custom_call.1} parent=1 // pred_check
      _
    $region23: #{tpu_custom_call.1} parent=1 // pred_check_branch
      %59 = sbr.rel (0) target = $region25
    $region24: #{tpu_custom_call.1} parent=1 // pred_region
      %61 = dma.done [#allocation7], 2048
    $region25: #{tpu_custom_call.1} parent=1 // pred_fallthru
      _
    %p62 = scmp.eq.s32.totalorder 0, 0
    // Predicated region
    $region26: #{tpu_custom_call.1} parent=1 // pred_check
      %p63 = pneg %p62
    $region27: #{tpu_custom_call.1} parent=1 // pred_check_branch
      %65 = sbr.rel (%p63) target = $region29
    $region28: #{tpu_custom_call.1} parent=1 // pred_region
      %66 = vst [vmem:[#allocation2] sm:$0xff] 0.0
      %67 = vst [vmem:[#allocation2 + $0x8] sm:$0xff] 0.0
      %68 = vst [vmem:[#allocation2 + $0x10] sm:$0xff] 0.0
      %69 = vst [vmem:[#allocation2 + $0x18] sm:$0xff] 0.0
      %70 = vst [vmem:[#allocation2 + $0x20] sm:$0xff] 0.0
      %71 = vst [vmem:[#allocation2 + $0x28] sm:$0xff] 0.0
      %72 = vst [vmem:[#allocation2 + $0x30] sm:$0xff] 0.0
      %73 = vst [vmem:[#allocation2 + $0x38] sm:$0xff] 0.0
      %74 = vst [vmem:[#allocation2 + $0x40] sm:$0xff] 0.0
      %75 = vst [vmem:[#allocation2 + $0x48] sm:$0xff] 0.0
      %76 = vst [vmem:[#allocation2 + $0x50] sm:$0xff] 0.0
      %77 = vst [vmem:[#allocation2 + $0x58] sm:$0xff] 0.0
      %78 = vst [vmem:[#allocation2 + $0x60] sm:$0xff] 0.0
      %79 = vst [vmem:[#allocation2 + $0x68] sm:$0xff] 0.0
      %80 = vst [vmem:[#allocation2 + $0x70] sm:$0xff] 0.0
      %81 = vst [vmem:[#allocation2 + $0x78] sm:$0xff] 0.0
    $region29: #{tpu_custom_call.1} parent=1 // pred_fallthru
      _
    %v82 = vld [vmem:[#allocation2] sm:$0xff]
    %v83 = vld [vmem:[#allocation2 + $0x8] sm:$0xff]
    %v84 = vld [vmem:[#allocation2 + $0x10] sm:$0xff]
    %v85 = vld [vmem:[#allocation2 + $0x18] sm:$0xff]
    %v86 = vld [vmem:[#allocation2 + $0x20] sm:$0xff]
    %v87 = vld [vmem:[#allocation2 + $0x28] sm:$0xff]
    %v88 = vld [vmem:[#allocation2 + $0x30] sm:$0xff]
    %v89 = vld [vmem:[#allocation2 + $0x38] sm:$0xff]
    %v90 = vld [vmem:[#allocation2 + $0x40] sm:$0xff]
    %v91 = vld [vmem:[#allocation2 + $0x48] sm:$0xff]
    %v92 = vld [vmem:[#allocation2 + $0x50] sm:$0xff]
    %v93 = vld [vmem:[#allocation2 + $0x58] sm:$0xff]
    %v94 = vld [vmem:[#allocation2 + $0x60] sm:$0xff]
    %v95 = vld [vmem:[#allocation2 + $0x68] sm:$0xff]
    %v96 = vld [vmem:[#allocation2 + $0x70] sm:$0xff]
    %v97 = vld [vmem:[#allocation2 + $0x78] sm:$0xff]
    %v98 = vld [vmem:[#allocation3] sm:$0xf]
    %v99 = vld [vmem:[#allocation3 + $0x4] sm:$0xf]
    %v100 = vld [vmem:[#allocation3 + $0x8] sm:$0xf]
    %v101 = vld [vmem:[#allocation3 + $0xc] sm:$0xf]
    %v102 = vld [vmem:[#allocation3 + $0x10] sm:$0xf]
    %v103 = vld [vmem:[#allocation3 + $0x14] sm:$0xf]
    %v104 = vld [vmem:[#allocation3 + $0x18] sm:$0xf]
    %v105 = vld [vmem:[#allocation3 + $0x1c] sm:$0xf]
    %v106 = vld [vmem:[#allocation3 + $0x20] sm:$0xf]
    %v107 = vld [vmem:[#allocation3 + $0x24] sm:$0xf]
    %v108 = vld [vmem:[#allocation3 + $0x28] sm:$0xf]
    %v109 = vld [vmem:[#allocation3 + $0x2c] sm:$0xf]
    %v110 = vld [vmem:[#allocation3 + $0x30] sm:$0xf]
    %v111 = vld [vmem:[#allocation3 + $0x34] sm:$0xf]
    %v112 = vld [vmem:[#allocation3 + $0x38] sm:$0xf]
    %v113 = vld [vmem:[#allocation3 + $0x3c] sm:$0xf]
    %v114 = vld [vmem:[#allocation6] sm:$0xf]
    %v115 = vld [vmem:[#allocation6 + $0x4] sm:$0xf]
    %v116 = vld [vmem:[#allocation6 + $0x8] sm:$0xf]
    %v117 = vld [vmem:[#allocation6 + $0xc] sm:$0xf]
    %v118 = vld [vmem:[#allocation6 + $0x10] sm:$0xf]
    %v119 = vld [vmem:[#allocation6 + $0x14] sm:$0xf]
    %v120 = vld [vmem:[#allocation6 + $0x18] sm:$0xf]
    %v121 = vld [vmem:[#allocation6 + $0x1c] sm:$0xf]
    %v122 = vld [vmem:[#allocation6 + $0x20] sm:$0xf]
    %v123 = vld [vmem:[#allocation6 + $0x24] sm:$0xf]
    %v124 = vld [vmem:[#allocation6 + $0x28] sm:$0xf]
    %v125 = vld [vmem:[#allocation6 + $0x2c] sm:$0xf]
    %v126 = vld [vmem:[#allocation6 + $0x30] sm:$0xf]
    %v127 = vld [vmem:[#allocation6 + $0x34] sm:$0xf]
    %v128 = vld [vmem:[#allocation6 + $0x38] sm:$0xf]
    %v129 = vld [vmem:[#allocation6 + $0x3c] sm:$0xf]
    %v146 = vunpack.c.l.b16 %v98
    %v147 = vunpack.c.l.b16 %v99
    %v148 = vunpack.c.l.b16 %v100
    %v149 = vunpack.c.l.b16 %v101
    %v150 = vunpack.c.l.b16 %v102
    %v151 = vunpack.c.l.b16 %v103
    %v152 = vunpack.c.l.b16 %v104
    %v153 = vunpack.c.l.b16 %v105
    %v154 = vunpack.c.l.b16 %v106
    %v155 = vunpack.c.l.b16 %v107
    %v156 = vunpack.c.l.b16 %v108
    %v157 = vunpack.c.l.b16 %v109
    %v158 = vunpack.c.l.b16 %v110
    %v159 = vunpack.c.l.b16 %v111
    %v160 = vunpack.c.l.b16 %v112
    %v161 = vunpack.c.l.b16 %v113
    %v162 = vpack.c.b16 %v147, %v146
    %v163 = vpack.c.b16 %v149, %v148
    %v164 = vpack.c.b16 %v151, %v150
    %v165 = vpack.c.b16 %v153, %v152
    %v166 = vpack.c.b16 %v155, %v154
    %v167 = vpack.c.b16 %v157, %v156
    %v168 = vpack.c.b16 %v159, %v158
    %v169 = vpack.c.b16 %v161, %v160
    %v194 = vunpack.c.l.b16 %v114
    %v195 = vunpack.c.l.b16 %v115
    %v196 = vunpack.c.l.b16 %v116
    %v197 = vunpack.c.l.b16 %v117
    %v198 = vunpack.c.l.b16 %v118
    %v199 = vunpack.c.l.b16 %v119
    %v200 = vunpack.c.l.b16 %v120
    %v201 = vunpack.c.l.b16 %v121
    %v202 = vunpack.c.l.b16 %v122
    %v203 = vunpack.c.l.b16 %v123
    %v204 = vunpack.c.l.b16 %v124
    %v205 = vunpack.c.l.b16 %v125
    %v206 = vunpack.c.l.b16 %v126
    %v207 = vunpack.c.l.b16 %v127
    %v208 = vunpack.c.l.b16 %v128
    %v209 = vunpack.c.l.b16 %v129
    %v210 = vpack.c.b16 %v195, %v194
    %v211 = vpack.c.b16 %v197, %v196
    %v212 = vpack.c.b16 %v199, %v198
    %v213 = vpack.c.b16 %v201, %v200
    %v214 = vpack.c.b16 %v203, %v202
    %v215 = vpack.c.b16 %v205, %v204
    %v216 = vpack.c.b16 %v207, %v206
    %v217 = vpack.c.b16 %v209, %v208
    %226 = vmatpush.bf16.msra.mxu0 %v217
    %227 = vmatpush.bf16.msra.mxu0 %v216
    %228 = vmatpush.bf16.msra.mxu0 %v215
    %229 = vmatpush.bf16.msra.mxu0 %v214
    %230 = vmatpush.bf16.msra.mxu0 %v213
    %231 = vmatpush.bf16.msra.mxu0 %v212
    %232 = vmatpush.bf16.msra.mxu0 %v211
    %233 = vmatpush.bf16.msra.mxu0 %v210
    %234 = vmatmul.bf16.gmra.mxu0 %v162
    %v235 = vpop.f32.mrf.mxu0
    %v236 = vadd.f32 0.0, %v235
    %v237 = vpop.f32.mrf.mxu0
    %v238 = vadd.f32 0.0, %v237
    %239 = vmatmul.bf16.gmra.mxu0 %v163
    %v240 = vpop.f32.mrf.mxu0
    %v241 = vadd.f32 0.0, %v240
    %v242 = vpop.f32.mrf.mxu0
    %v243 = vadd.f32 0.0, %v242
    %244 = vmatmul.bf16.gmra.mxu0 %v164
    %v245 = vpop.f32.mrf.mxu0
    %v246 = vadd.f32 0.0, %v245
    %v247 = vpop.f32.mrf.mxu0
    %v248 = vadd.f32 0.0, %v247
    %249 = vmatmul.bf16.gmra.mxu0 %v165
    %v250 = vpop.f32.mrf.mxu0
    %v251 = vadd.f32 0.0, %v250
    %v252 = vpop.f32.mrf.mxu0
    %v253 = vadd.f32 0.0, %v252
    %254 = vmatmul.bf16.gmra.mxu0 %v166
    %v255 = vpop.f32.mrf.mxu0
    %v256 = vadd.f32 0.0, %v255
    %v257 = vpop.f32.mrf.mxu0
    %v258 = vadd.f32 0.0, %v257
    %259 = vmatmul.bf16.gmra.mxu0 %v167
    %v260 = vpop.f32.mrf.mxu0
    %v261 = vadd.f32 0.0, %v260
    %v262 = vpop.f32.mrf.mxu0
    %v263 = vadd.f32 0.0, %v262
    %264 = vmatmul.bf16.gmra.mxu0 %v168
    %v265 = vpop.f32.mrf.mxu0
    %v266 = vadd.f32 0.0, %v265
    %v267 = vpop.f32.mrf.mxu0
    %v268 = vadd.f32 0.0, %v267
    %269 = vmatmul.bf16.gmra.mxu0 %v169
    %v270 = vpop.f32.mrf.mxu0
    %v271 = vadd.f32 0.0, %v270
    %v272 = vpop.f32.mrf.mxu0
    %v273 = vadd.f32 0.0, %v272
    %274 = vdwg.mxu0
    %v275 = vadd.f32 %v82, %v236
    %v276 = vadd.f32 %v83, %v238
    %v277 = vadd.f32 %v84, %v241
    %v278 = vadd.f32 %v85, %v243
    %v279 = vadd.f32 %v86, %v246
    %v280 = vadd.f32 %v87, %v248
    %v281 = vadd.f32 %v88, %v251
    %v282 = vadd.f32 %v89, %v253
    %v283 = vadd.f32 %v90, %v256
    %v284 = vadd.f32 %v91, %v258
    %v285 = vadd.f32 %v92, %v261
    %v286 = vadd.f32 %v93, %v263
    %v287 = vadd.f32 %v94, %v266
    %v288 = vadd.f32 %v95, %v268
    %v289 = vadd.f32 %v96, %v271
    %v290 = vadd.f32 %v97, %v273
    %291 = vst [vmem:[#allocation2] sm:$0xff] %v275
    %292 = vst [vmem:[#allocation2 + $0x8] sm:$0xff] %v276
    %293 = vst [vmem:[#allocation2 + $0x10] sm:$0xff] %v277
    %294 = vst [vmem:[#allocation2 + $0x18] sm:$0xff] %v278
    %295 = vst [vmem:[#allocation2 + $0x20] sm:$0xff] %v279
    %296 = vst [vmem:[#allocation2 + $0x28] sm:$0xff] %v280
    %297 = vst [vmem:[#allocation2 + $0x30] sm:$0xff] %v281
    %298 = vst [vmem:[#allocation2 + $0x38] sm:$0xff] %v282
    %299 = vst [vmem:[#allocation2 + $0x40] sm:$0xff] %v283
    %300 = vst [vmem:[#allocation2 + $0x48] sm:$0xff] %v284
    %301 = vst [vmem:[#allocation2 + $0x50] sm:$0xff] %v285
    %302 = vst [vmem:[#allocation2 + $0x58] sm:$0xff] %v286
    %303 = vst [vmem:[#allocation2 + $0x60] sm:$0xff] %v287
    %304 = vst [vmem:[#allocation2 + $0x68] sm:$0xff] %v288
    %305 = vst [vmem:[#allocation2 + $0x70] sm:$0xff] %v289
    %306 = vst [vmem:[#allocation2 + $0x78] sm:$0xff] %v290
    // Predicated region
    $region30: #{tpu_custom_call.1} parent=1 // pred_check
      %p307 = pneg %p62
    $region31: #{tpu_custom_call.1} parent=1 // pred_check_branch
      %309 = sbr.rel (%p307) target = $region33
    $region32: #{tpu_custom_call.1} parent=1 // pred_region
      %v310 = vld [vmem:[#allocation2] sm:$0xff]
      %v311 = vld [vmem:[#allocation2 + $0x8] sm:$0xff]
      %v312 = vld [vmem:[#allocation2 + $0x10] sm:$0xff]
      %v313 = vld [vmem:[#allocation2 + $0x18] sm:$0xff]
      %v314 = vld [vmem:[#allocation2 + $0x20] sm:$0xff]
      %v315 = vld [vmem:[#allocation2 + $0x28] sm:$0xff]
      %v316 = vld [vmem:[#allocation2 + $0x30] sm:$0xff]
      %v317 = vld [vmem:[#allocation2 + $0x38] sm:$0xff]
      %v318 = vld [vmem:[#allocation2 + $0x40] sm:$0xff]
      %v319 = vld [vmem:[#allocation2 + $0x48] sm:$0xff]
      %v320 = vld [vmem:[#allocation2 + $0x50] sm:$0xff]
      %v321 = vld [vmem:[#allocation2 + $0x58] sm:$0xff]
      %v322 = vld [vmem:[#allocation2 + $0x60] sm:$0xff]
      %v323 = vld [vmem:[#allocation2 + $0x68] sm:$0xff]
      %v324 = vld [vmem:[#allocation2 + $0x70] sm:$0xff]
      %v325 = vld [vmem:[#allocation2 + $0x78] sm:$0xff]
      %v326 = vld [vmem:[#allocation8] sm:$0xff]
      %v327 = vld [vmem:[#allocation8 + $0x8] sm:$0xff]
      %v328 = vld [vmem:[#allocation8 + $0x10] sm:$0xff]
      %v329 = vld [vmem:[#allocation8 + $0x18] sm:$0xff]
      %v330 = vld [vmem:[#allocation8 + $0x20] sm:$0xff]
      %v331 = vld [vmem:[#allocation8 + $0x28] sm:$0xff]
      %v332 = vld [vmem:[#allocation8 + $0x30] sm:$0xff]
      %v333 = vld [vmem:[#allocation8 + $0x38] sm:$0xff]
      %v334 = vld [vmem:[#allocation8 + $0x40] sm:$0xff]
      %v335 = vld [vmem:[#allocation8 + $0x48] sm:$0xff]
      %v336 = vld [vmem:[#allocation8 + $0x50] sm:$0xff]
      %v337 = vld [vmem:[#allocation8 + $0x58] sm:$0xff]
      %v338 = vld [vmem:[#allocation8 + $0x60] sm:$0xff]
      %v339 = vld [vmem:[#allocation8 + $0x68] sm:$0xff]
      %v340 = vld [vmem:[#allocation8 + $0x70] sm:$0xff]
      %v341 = vld [vmem:[#allocation8 + $0x78] sm:$0xff]
      %342 = vmatpush.msra.mxu0 %v341
      %343 = vmatpush.msra.mxu0 %v340
      %344 = vmatpush.msra.mxu0 %v339
      %345 = vmatpush.msra.mxu0 %v338
      %346 = vmatpush.msra.mxu0 %v337
      %347 = vmatpush.msra.mxu0 %v336
      %348 = vmatpush.msra.mxu0 %v335
      %349 = vmatpush.msra.mxu0 %v334
      %350 = vmatpush.msra.mxu0 %v333
      %351 = vmatpush.msra.mxu0 %v332
      %352 = vmatpush.msra.mxu0 %v331
      %353 = vmatpush.msra.mxu0 %v330
      %354 = vmatpush.msra.mxu0 %v329
      %355 = vmatpush.msra.mxu0 %v328
      %356 = vmatpush.msra.mxu0 %v327
      %357 = vmatpush.msra.mxu0 %v326
      %358 = vmatmul.f32.gmra.mxu0 %v310
      %v359 = vpop.f32.mrf.mxu0
      %v360 = vadd.f32 0.0, %v359
      %361 = vmatmul.f32.gmra.mxu0 %v311
      %v362 = vpop.f32.mrf.mxu0
      %v363 = vadd.f32 0.0, %v362
      %364 = vmatmul.f32.gmra.mxu0 %v312
      %v365 = vpop.f32.mrf.mxu0
      %v366 = vadd.f32 0.0, %v365
      %367 = vmatmul.f32.gmra.mxu0 %v313
      %v368 = vpop.f32.mrf.mxu0
      %v369 = vadd.f32 0.0, %v368
      %370 = vmatmul.f32.gmra.mxu0 %v314
      %v371 = vpop.f32.mrf.mxu0
      %v372 = vadd.f32 0.0, %v371
      %373 = vmatmul.f32.gmra.mxu0 %v315
      %v374 = vpop.f32.mrf.mxu0
      %v375 = vadd.f32 0.0, %v374
      %376 = vmatmul.f32.gmra.mxu0 %v316
      %v377 = vpop.f32.mrf.mxu0
      %v378 = vadd.f32 0.0, %v377
      %379 = vmatmul.f32.gmra.mxu0 %v317
      %v380 = vpop.f32.mrf.mxu0
      %v381 = vadd.f32 0.0, %v380
      %382 = vmatmul.f32.gmra.mxu0 %v318
      %v383 = vpop.f32.mrf.mxu0
      %v384 = vadd.f32 0.0, %v383
      %385 = vmatmul.f32.gmra.mxu0 %v319
      %v386 = vpop.f32.mrf.mxu0
      %v387 = vadd.f32 0.0, %v386
      %388 = vmatmul.f32.gmra.mxu0 %v320
      %v389 = vpop.f32.mrf.mxu0
      %v390 = vadd.f32 0.0, %v389
      %391 = vmatmul.f32.gmra.mxu0 %v321
      %v392 = vpop.f32.mrf.mxu0
      %v393 = vadd.f32 0.0, %v392
      %394 = vmatmul.f32.gmra.mxu0 %v322
      %v395 = vpop.f32.mrf.mxu0
      %v396 = vadd.f32 0.0, %v395
      %397 = vmatmul.f32.gmra.mxu0 %v323
      %v398 = vpop.f32.mrf.mxu0
      %v399 = vadd.f32 0.0, %v398
      %400 = vmatmul.f32.gmra.mxu0 %v324
      %v401 = vpop.f32.mrf.mxu0
      %v402 = vadd.f32 0.0, %v401
      %403 = vmatmul.f32.gmra.mxu0 %v325
      %v404 = vpop.f32.mrf.mxu0
      %v405 = vadd.f32 0.0, %v404
      %406 = vdwg.mxu0
      %v407 = vmax.f32 %v360, 0.0
      %v408 = vmax.f32 %v363, 0.0
      %v409 = vmax.f32 %v366, 0.0
      %v410 = vmax.f32 %v369, 0.0
      %v411 = vmax.f32 %v372, 0.0
      %v412 = vmax.f32 %v375, 0.0
      %v413 = vmax.f32 %v378, 0.0
      %v414 = vmax.f32 %v381, 0.0
      %v415 = vmax.f32 %v384, 0.0
      %v416 = vmax.f32 %v387, 0.0
      %v417 = vmax.f32 %v390, 0.0
      %v418 = vmax.f32 %v393, 0.0
      %v419 = vmax.f32 %v396, 0.0
      %v420 = vmax.f32 %v399, 0.0
      %v421 = vmax.f32 %v402, 0.0
      %v422 = vmax.f32 %v405, 0.0
      %423 = vst [vmem:[#allocation9] sm:$0xff] %v407
      %424 = vst [vmem:[#allocation9 + $0x8] sm:$0xff] %v408
      %425 = vst [vmem:[#allocation9 + $0x10] sm:$0xff] %v409
      %426 = vst [vmem:[#allocation9 + $0x18] sm:$0xff] %v410
      %427 = vst [vmem:[#allocation9 + $0x20] sm:$0xff] %v411
      %428 = vst [vmem:[#allocation9 + $0x28] sm:$0xff] %v412
      %429 = vst [vmem:[#allocation9 + $0x30] sm:$0xff] %v413
      %430 = vst [vmem:[#allocation9 + $0x38] sm:$0xff] %v414
      %431 = vst [vmem:[#allocation9 + $0x40] sm:$0xff] %v415
      %432 = vst [vmem:[#allocation9 + $0x48] sm:$0xff] %v416
      %433 = vst [vmem:[#allocation9 + $0x50] sm:$0xff] %v417
      %434 = vst [vmem:[#allocation9 + $0x58] sm:$0xff] %v418
      %435 = vst [vmem:[#allocation9 + $0x60] sm:$0xff] %v419
      %436 = vst [vmem:[#allocation9 + $0x68] sm:$0xff] %v420
      %437 = vst [vmem:[#allocation9 + $0x70] sm:$0xff] %v421
      %438 = vst [vmem:[#allocation9 + $0x78] sm:$0xff] %v422
    $region33: #{tpu_custom_call.1} parent=1 // pred_fallthru
      _
    // Predicated region
    $region34: #{tpu_custom_call.1} parent=1 // pred_check
      _
    $region35: #{tpu_custom_call.1} parent=1 // pred_check_branch
      %440 = sbr.rel (0) target = $region37
    $region36: #{tpu_custom_call.1} parent=1 // pred_region
      %442 = vsyncadd [#allocation5], 0
      %s443 = sshll.u32 [#allocation9], 4
      %s444 = int_to_ptr.vmem [resolvable:$true] %s443
      %s445 = sshll.u32 %s3, 4
      %s446 = int_to_ptr.hbm [resolvable:$true] %s445
      %451 = dma.vmem_to_hbm [thread:$0]  %s444, 2048, %s446, [#allocation5], 128, 128, 8
    $region37: #{tpu_custom_call.1} parent=1 // pred_fallthru
      _
    // Predicated region
    $region38: #{tpu_custom_call.1} parent=1 // pred_check
      _
    $region39: #{tpu_custom_call.1} parent=1 // pred_check_branch
      %453 = sbr.rel (0) target = $region41
    $region40: #{tpu_custom_call.1} parent=1 // pred_region
      %455 = dma.done [#allocation5], 2048
    $region41: #{tpu_custom_call.1} parent=1 // pred_fallthru
      _
    %456 = vsyncpa [#allocation4], 1
    %457 = vsyncpa [#allocation7], 1
    %458 = vsyncpa [#allocation5], 1

</llo_original>
